<compile_context>
chip_gen: v7x
topology: tpu7x:2x2x1
jax: 0.10.0
libtpu: 0.0.40
codegen_flags: <defaults>
</compile_context>

<pallas_src>
import math

import numpy as np

import jax
import jax.numpy as jnp
from jax import lax
from jax.experimental import pallas as pl
from jax.experimental.pallas import tpu as pltpu

_NEG_SLOPE = 0.01            # nn.LeakyReLU default
_STAGE_DTYPE = jnp.float32   # unpacked sublanes -> plain masked stores for the
                             # row-offset tap copies; bf16 cast happens at the dot.


def _ceil_div(a, b):
    return -(-a // b)


def _build_fused_kernel(dims, kernel_size, padding, nb, negative_slope):
    """Whole-depth fused Conv(+bias)(+LeakyReLU) stack for `nb` images per step."""
    depth = len(dims)
    KH = kernel_size
    p = padding

    def _stage_tap(stage_ref, src, d, kh):
        # src: (nb, hi, in_lanes) f32 value.  stage_ref: (nb, ho, KH*in_lanes) f32.
        # Copies row-tap `kh` into lane block kh of the matmul LHS; rows that fall
        # in the H zero-pad halo are written as zeros (border-only zeroing; the
        # interior is always fully overwritten each grid step).
        L, s, ho, hi = d["in_lanes"], d["s"], d["ho"], d["hi"]
        c0, c1 = kh * L, (kh + 1) * L
        oh_lo = max(0, _ceil_div(p - kh, s))
        oh_hi = max(oh_lo, min(ho, (hi - 1 - kh + p) // s + 1))
        if oh_lo > 0:
            stage_ref[:, 0:oh_lo, c0:c1] = jnp.zeros((nb, oh_lo, L), _STAGE_DTYPE)
        if oh_hi < ho:
            stage_ref[:, oh_hi:ho, c0:c1] = jnp.zeros((nb, ho - oh_hi, L), _STAGE_DTYPE)
        n = oh_hi - oh_lo
        if n > 0:
            src_lo = oh_lo * s + kh - p
            if s == 1:
                rows = lax.slice(src, (0, src_lo, 0), (nb, src_lo + n, L))
            else:
                # TODO(synk): for stride>1 pre-compact the `s` phases once per layer
                # instead of one sublane-strided gather per tap (keeps the XLU free).
                rows = lax.slice(src, (0, src_lo, 0),
                                 (nb, src_lo + (n - 1) * s + 1, L), (1, s, 1))
            stage_ref[:, oh_lo:oh_hi, c0:c1] = rows

    def kernel(x_ref, *refs):
        w_refs = [refs[2 * i] for i in range(depth)]
        b_refs = [refs[2 * i + 1] for i in range(depth)]
        o_ref = refs[2 * depth]
        stage_refs = list(refs[2 * depth + 1:])

        # Layer-0 matmul-LHS staging straight from the (unpadded) input block.
        xv = x_ref[...].astype(_STAGE_DTYPE)
        for kh in range(KH):
            _stage_tap(stage_refs[0], xv, dims[0], kh)

        for i, d in enumerate(dims):
            m = nb * d["ho"]
            # (nb, ho, K) -> (nb*ho, K) is a free leading-dim collapse; one bf16
            # MXU dot per layer with K = KH*W*Cin (all taps merged), f32 accumulate.
            lhs = stage_refs[i][...].reshape(m, d["k_dim"]).astype(jnp.bfloat16)
            acc = jnp.dot(lhs, w_refs[i][...], preferred_element_type=jnp.float32)
            acc = acc + b_refs[i][...]                       # f32 bias epilogue
            if i < depth - 1:
                acc = jnp.where(acc >= 0, acc, negative_slope * acc)   # LeakyReLU
                nxt = acc.reshape(nb, d["ho"], d["out_lanes"])
                for kh in range(KH):
                    _stage_tap(stage_refs[i + 1], nxt, dims[i + 1], kh)
            else:
                # Lane-dense final store: (nb, Ho, Wo*Cout), unmasked when %128==0.
                o_ref[...] = acc.reshape(nb, d["ho"], d["out_lanes"]).astype(o_ref.dtype)

    return kernel


class ConvolutionLayerPallas:
    """JAX/Pallas port of model/modules/convolution_layer.py::ConvolutionLayer."""

    def __init__(self, depth, in_channels, out_channels, kernel_size,
                 stride=1, padding=0, use_hex_conv=False, *, key):
        if use_hex_conv:
            # TODO(synk): hex_conv.HexConv has no clean Pallas equivalent; only the
            # standard nn.Conv2d path is implemented.
            raise NotImplementedError("use_hex_conv=True is not supported")

        self.depth = depth
        self.in_channels = in_channels
        self.padding = padding
        self.kernel_size = kernel_size
        self._plan_cache = {}

        self.layers = []  # dicts: w_hwio (f32), b (f32), stride, cout
        for i in range(depth):
            s = stride if i == 0 else 1
            o = out_channels if i == depth - 1 else in_channels
            key, kw_key, kb_key = jax.random.split(key, 3)
            fan_in = in_channels * kernel_size * kernel_size
            # torch re-inits weights with kaiming_uniform_ (a=0): bound=sqrt(6/fan_in)
            bound_w = math.sqrt(6.0 / fan_in)
            w_oihw = jax.random.uniform(
                kw_key, (o, in_channels, kernel_size, kernel_size),
                jnp.float32, -bound_w, bound_w)
            # nn.Conv2d default bias init: U(-1/sqrt(fan_in), 1/sqrt(fan_in)).
            bound_b = 1.0 / math.sqrt(fan_in)
            bias = jax.random.uniform(kb_key, (o,), jnp.float32, -bound_b, bound_b)
            w_hwio = jnp.transpose(w_oihw, (2, 3, 1, 0))   # (KH, KW, Cin, Cout)
            self.layers.append(dict(w_hwio=w_hwio, b=bias, stride=s, cout=o))

    # ---- host-side plan (banded merged weights), cached per spatial shape ------
    def _plan(self, H, W):
        cache_key = (H, W)
        if cache_key in self._plan_cache:
            return self._plan_cache[cache_key]

        K, p = self.kernel_size, self.padding
        dims, ops = [], []
        h, w, ci = H, W, self.in_channels
        for li, lyr in enumerate(self.layers):
            s, co = lyr["stride"], lyr["cout"]
            ho = (h + 2 * p - K) // s + 1
            wo = (w + 2 * p - K) // s + 1
            last = li == len(self.layers) - 1
            co_pad = co
            if not last:
                # Pad intermediate channels so wo*co_pad is a multiple of 128 lanes
                # (unmasked stores, full-width MXU N) when it is cheap to do so.
                g = 128 // math.gcd(wo, 128)
                cand = _ceil_div(co, g) * g
                if cand != co and cand <= max(2 * co, co + 8):
                    co_pad = cand
            d = dict(hi=h, wi=w, ci=ci, s=s, ho=ho, wo=wo, co=co, co_pad=co_pad,
                     in_lanes=w * ci, out_lanes=wo * co_pad, k_dim=K * w * ci)
            dims.append(d)

            # Banded, tap-merged weight (KH*W*Cin, Wo*Cout_pad): width stride and
            # width zero-padding folded in (out-of-range taps dropped).
            whwio = np.asarray(lyr["w_hwio"], np.float32)      # (K, K, cin, cout)
            tcin = whwio.shape[2]
            B = np.zeros((d["k_dim"], d["out_lanes"]), np.float32)
            bias = np.zeros((1, d["out_lanes"]), np.float32)
            bvec = np.asarray(lyr["b"], np.float32)
            for wo_i in range(wo):
                col0 = wo_i * co_pad
                bias[0, col0:col0 + co] = bvec
                for kh in range(K):
                    for kw in range(K):
                        w_src = wo_i * s + kw - p
                        if 0 <= w_src < w:
                            r0 = kh * d["in_lanes"] + w_src * ci
                            B[r0:r0 + tcin, col0:col0 + co] = whwio[kh, kw]
            ops.append((jnp.asarray(B, jnp.bfloat16), jnp.asarray(bias, jnp.float32)))
            h, w, ci = ho, wo, co_pad

        plan = (dims, ops)
        self._plan_cache[cache_key] = plan
        return plan

    # ---- forward ----------------------------------------------------------------
    def __call__(self, img_nchw):
        x = jnp.transpose(img_nchw, (0, 2, 3, 1))          # NCHW -> NHWC
        N, H, W, Cin = x.shape
        assert Cin == self.in_channels

        dims, ops = self._plan(H, W)
        df = dims[-1]

        # Fold batch into the MXU M dimension: nb images per grid step (M = nb*Ho).
        nb = 1
        for cand in range(min(N, 8), 0, -1):
            if N % cand == 0:
                nb = cand
                break
        # TODO(synk): row-tiled grid axis with per-layer halos for large feature maps
        #             (bounds VMEM on v7x's 64 MiB and gives its 2 TCs a parallel axis).

        x_flat = x.reshape(N, H, W * Cin).astype(jnp.bfloat16)   # W folded into lanes

        kernel = _build_fused_kernel(dims, self.kernel_size, self.padding, nb,
                                     _NEG_SLOPE)

        in_specs = [pl.BlockSpec((nb, H, W * Cin), lambda n: (n, 0, 0))]
        operands = [x_flat]
        for (B, bias) in ops:
            # Constant-index weight/bias blocks; left on default pipelining since the
            # whole weight stack is only a few hundred KiB at these shapes.
            in_specs.append(pl.BlockSpec(B.shape, lambda n: (0, 0)))
            in_specs.append(pl.BlockSpec(bias.shape, lambda n: (0, 0)))
            operands.extend([B, bias])

        scratch_shapes = [pltpu.VMEM((nb, d["ho"], d["k_dim"]), _STAGE_DTYPE)
                          for d in dims]

        out_shape = jax.ShapeDtypeStruct((N, df["ho"], df["out_lanes"]), jnp.float32)
        out_spec = pl.BlockSpec((nb, df["ho"], df["out_lanes"]), lambda n: (n, 0, 0))

        # VMEM budget from actual buffer sizes (x2 for pipeline double-buffering)
        # plus generous headroom for compiler-internal scratch.
        vmem = 2 * nb * H * W * Cin * 2
        vmem += sum(2 * (int(B.size) * 2 + int(b.size) * 4) for B, b in ops)
        vmem += 2 * nb * df["ho"] * df["out_lanes"] * 4
        vmem += sum(nb * d["ho"] * d["k_dim"] * 4 for d in dims)
        vmem_limit = int(min(96 * 1024 * 1024, 2 * vmem + 8 * 1024 * 1024))

        out = pl.pallas_call(
            kernel,
            out_shape=out_shape,
            grid_spec=pltpu.PrefetchScalarGridSpec(
                num_scalar_prefetch=0,
                grid=(N // nb,),
                in_specs=in_specs,
                out_specs=out_spec,
                scratch_shapes=scratch_shapes,
            ),
            compiler_params=pltpu.CompilerParams(
                dimension_semantics=("parallel",),
                vmem_limit_bytes=vmem_limit,
            ),
        )(*operands)

        # (N, Ho, Wo*Cout_pad) -> NHWC (drop any channel padding) -> NCHW
        y = out.reshape(N, df["ho"], df["wo"], df["co_pad"])
        if df["co_pad"] != df["co"]:
            y = y[..., :df["co"]]
        return jnp.transpose(y, (0, 3, 1, 2))


def _reference_forward(x_nchw, layer: ConvolutionLayerPallas):
    """Pure-JAX (XLA conv) reference applying the same bf16 operand rounding."""
    q = lambda t: t.astype(jnp.bfloat16).astype(jnp.float32)
    x = x_nchw
    p = layer.padding
    for i, lyr in enumerate(layer.layers):
        w_oihw = jnp.transpose(q(lyr["w_hwio"]), (3, 2, 0, 1))
        x = lax.conv_general_dilated(
            q(x), w_oihw, (lyr["stride"], lyr["stride"]),
            [(p, p), (p, p)],
            dimension_numbers=("NCHW", "OIHW", "NCHW"),
            precision=lax.Precision.HIGHEST)
        x = x + lyr["b"][None, :, None, None]
        if i < layer.depth - 1:
            x = jnp.where(x >= 0, x, _NEG_SLOPE * x)   # LeakyReLU between convs only
    return x


if __name__ == "__main__":
    key = jax.random.PRNGKey(0)
    key, x_key, p_key = jax.random.split(key, 3)

    # Small shapes consistent with the module: batch=2, in_channels=4, 16x16 images.
    N, Cin, H, W = 2, 4, 16, 16
    depth, Cout, ksize, stride, padding = 2, 8, 3, 1, 1

    x = jax.random.normal(x_key, (N, Cin, H, W), jnp.float32)

    layer = ConvolutionLayerPallas(depth, Cin, Cout, ksize,
                                   stride=stride, padding=padding, key=p_key)

    out = jax.block_until_ready(layer(x))
    ref = jax.block_until_ready(_reference_forward(x, layer))

    assert out.shape == ref.shape, (out.shape, ref.shape)
    max_err = float(jnp.max(jnp.abs(out - ref)))
    assert jnp.allclose(out, ref, atol=1e-2, rtol=1e-2), f"mismatch, max|err|={max_err}"

    print("KERNEL_OK")
</pallas_src>

<mosaic_0001>
module attributes {stable_mosaic.version = 11 : i64} {
  func.func @kernel(%arg0: i32, %arg1: memref<2x16x64xbf16, #tpu.memory_space<vmem>>, %arg2: memref<192x128xbf16, #tpu.memory_space<vmem>>, %arg3: memref<1x128xf32, #tpu.memory_space<vmem>>, %arg4: memref<384x128xbf16, #tpu.memory_space<vmem>>, %arg5: memref<1x128xf32, #tpu.memory_space<vmem>>, %arg6: memref<2x16x128xf32, #tpu.memory_space<vmem>>, %arg7: memref<2x16x192xf32, #tpu.memory_space<vmem>>, %arg8: memref<2x16x384xf32, #tpu.memory_space<vmem>>) attributes {dimension_semantics = [#tpu.dimension_semantics<parallel>], iteration_bounds = array<i64: 1>, scalar_prefetch = 0 : i64, scratch_operands = 2 : i64, tpu.core_type = #tpu.core_type<tc>, window_params = [{transform_indices = @transform_0, window_bounds = array<i64: 2, 16, 64>}, {pipeline_mode = #tpu.pipeline_mode<synchronous>, transform_indices = @transform_1, window_bounds = array<i64: 192, 128>}, {pipeline_mode = #tpu.pipeline_mode<synchronous>, transform_indices = @transform_2, window_bounds = array<i64: 1, 128>}, {pipeline_mode = #tpu.pipeline_mode<synchronous>, transform_indices = @transform_3, window_bounds = array<i64: 384, 128>}, {pipeline_mode = #tpu.pipeline_mode<synchronous>, transform_indices = @transform_4, window_bounds = array<i64: 1, 128>}, {transform_indices = @transform_5, window_bounds = array<i64: 2, 16, 128>}]} {
    %c0 = arith.constant 0 : index
    %c0_0 = arith.constant 0 : index
    %c0_1 = arith.constant 0 : index
    %0 = vector.load %arg1[%c0, %c0_0, %c0_1] : memref<2x16x64xbf16, #tpu.memory_space<vmem>>, vector<2x16x64xbf16>
    %1 = arith.extf %0 : vector<2x16x64xbf16> to vector<2x16x64xf32>
    %cst = arith.constant 0.000000e+00 : f32
    %2 = vector.broadcast %cst : f32 to vector<2x1x64xf32>
    %c0_2 = arith.constant 0 : index
    %c0_3 = arith.constant 0 : index
    %c0_4 = arith.constant 0 : index
    %3 = vector.load %arg7[%c0_2, %c0_3, %c0_4] : memref<2x16x192xf32, #tpu.memory_space<vmem>>, vector<2x1x64xf32>
    tpu.vector_store %arg7[%c0_2, %c0_3, %c0_4], %2 {strides = array<i32>} : memref<2x16x192xf32, #tpu.memory_space<vmem>>, vector<2x1x64xf32>,
    %4 = vector.extract_strided_slice %1 {offsets = [0, 0, 0], sizes = [2, 15, 64], strides = [1, 1, 1]} : vector<2x16x64xf32> to vector<2x15x64xf32>
    %c0_5 = arith.constant 0 : index
    %c1 = arith.constant 1 : index
    %c0_6 = arith.constant 0 : index
    %5 = vector.load %arg7[%c0_5, %c1, %c0_6] : memref<2x16x192xf32, #tpu.memory_space<vmem>>, vector<2x15x64xf32>
    tpu.vector_store %arg7[%c0_5, %c1, %c0_6], %4 {strides = array<i32>} : memref<2x16x192xf32, #tpu.memory_space<vmem>>, vector<2x15x64xf32>,
    %6 = vector.extract_strided_slice %1 {offsets = [0, 0, 0], sizes = [2, 16, 64], strides = [1, 1, 1]} : vector<2x16x64xf32> to vector<2x16x64xf32>
    %c0_7 = arith.constant 0 : index
    %c0_8 = arith.constant 0 : index
    %c64 = arith.constant 64 : index
    %7 = vector.load %arg7[%c0_7, %c0_8, %c64] : memref<2x16x192xf32, #tpu.memory_space<vmem>>, vector<2x16x64xf32>
    tpu.vector_store %arg7[%c0_7, %c0_8, %c64], %6 {strides = array<i32>} : memref<2x16x192xf32, #tpu.memory_space<vmem>>, vector<2x16x64xf32>,
    %cst_9 = arith.constant 0.000000e+00 : f32
    %8 = vector.broadcast %cst_9 : f32 to vector<2x1x64xf32>
    %c0_10 = arith.constant 0 : index
    %c15 = arith.constant 15 : index
    %c128 = arith.constant 128 : index
    %9 = vector.load %arg7[%c0_10, %c15, %c128] : memref<2x16x192xf32, #tpu.memory_space<vmem>>, vector<2x1x64xf32>
    tpu.vector_store %arg7[%c0_10, %c15, %c128], %8 {strides = array<i32>} : memref<2x16x192xf32, #tpu.memory_space<vmem>>, vector<2x1x64xf32>,
    %10 = vector.extract_strided_slice %1 {offsets = [0, 1, 0], sizes = [2, 15, 64], strides = [1, 1, 1]} : vector<2x16x64xf32> to vector<2x15x64xf32>
    %c0_11 = arith.constant 0 : index
    %c0_12 = arith.constant 0 : index
    %c128_13 = arith.constant 128 : index
    %11 = vector.load %arg7[%c0_11, %c0_12, %c128_13] : memref<2x16x192xf32, #tpu.memory_space<vmem>>, vector<2x15x64xf32>
    tpu.vector_store %arg7[%c0_11, %c0_12, %c128_13], %10 {strides = array<i32>} : memref<2x16x192xf32, #tpu.memory_space<vmem>>, vector<2x15x64xf32>,
    %c0_14 = arith.constant 0 : index
    %c0_15 = arith.constant 0 : index
    %c0_16 = arith.constant 0 : index
    %12 = vector.load %arg7[%c0_14, %c0_15, %c0_16] : memref<2x16x192xf32, #tpu.memory_space<vmem>>, vector<2x16x192xf32>
    %13 = vector.shape_cast %12 : vector<2x16x192xf32> to vector<32x192xf32>
    %14 = arith.truncf %13 : vector<32x192xf32> to vector<32x192xbf16>
    %c0_17 = arith.constant 0 : index
    %c0_18 = arith.constant 0 : index
    %15 = vector.load %arg2[%c0_17, %c0_18] : memref<192x128xbf16, #tpu.memory_space<vmem>>, vector<192x128xbf16>
    %cst_19 = arith.constant dense<0.000000e+00> : vector<32x128xf32>
    %16 = tpu.matmul %14, %15, %cst_19 {dimension_numbers = #tpu.dot_dimension_numbers<[1], [0], [0], [1], [0, 0, 1, 1], [], []>} : vector<32x192xbf16>, vector<192x128xbf16>, vector<32x128xf32> -> vector<32x128xf32>
    %c0_20 = arith.constant 0 : index
    %c0_21 = arith.constant 0 : index
    %17 = vector.load %arg3[%c0_20, %c0_21] : memref<1x128xf32, #tpu.memory_space<vmem>>, vector<1x128xf32>
    %18 = vector.broadcast %17 : vector<1x128xf32> to vector<32x128xf32>
    %19 = arith.addf %16, %18 : vector<32x128xf32>
    %cst_22 = arith.constant 0.000000e+00 : f32
    %20 = vector.broadcast %cst_22 : f32 to vector<32x128xf32>
    %21 = arith.cmpf oge, %19, %20 : vector<32x128xf32>
    %cst_23 = arith.constant 0.00999999977 : f32
    %22 = vector.broadcast %cst_23 : f32 to vector<32x128xf32>
    %23 = arith.mulf %22, %19 : vector<32x128xf32>
    %24 = arith.select %21, %19, %23 : vector<32x128xi1>, vector<32x128xf32>
    %25 = vector.shape_cast %24 : vector<32x128xf32> to vector<2x16x128xf32>
    %cst_24 = arith.constant 0.000000e+00 : f32
    %26 = vector.broadcast %cst_24 : f32 to vector<2x1x128xf32>
    %c0_25 = arith.constant 0 : index
    %c0_26 = arith.constant 0 : index
    %c0_27 = arith.constant 0 : index
    %27 = vector.load %arg8[%c0_25, %c0_26, %c0_27] : memref<2x16x384xf32, #tpu.memory_space<vmem>>, vector<2x1x128xf32>
    tpu.vector_store %arg8[%c0_25, %c0_26, %c0_27], %26 {strides = array<i32>} : memref<2x16x384xf32, #tpu.memory_space<vmem>>, vector<2x1x128xf32>,
    %28 = vector.extract_strided_slice %25 {offsets = [0, 0, 0], sizes = [2, 15, 128], strides = [1, 1, 1]} : vector<2x16x128xf32> to vector<2x15x128xf32>
    %c0_28 = arith.constant 0 : index
    %c1_29 = arith.constant 1 : index
    %c0_30 = arith.constant 0 : index
    %29 = vector.load %arg8[%c0_28, %c1_29, %c0_30] : memref<2x16x384xf32, #tpu.memory_space<vmem>>, vector<2x15x128xf32>
    tpu.vector_store %arg8[%c0_28, %c1_29, %c0_30], %28 {strides = array<i32>} : memref<2x16x384xf32, #tpu.memory_space<vmem>>, vector<2x15x128xf32>,
    %30 = vector.extract_strided_slice %25 {offsets = [0, 0, 0], sizes = [2, 16, 128], strides = [1, 1, 1]} : vector<2x16x128xf32> to vector<2x16x128xf32>
    %c0_31 = arith.constant 0 : index
    %c0_32 = arith.constant 0 : index
    %c128_33 = arith.constant 128 : index
    %31 = vector.load %arg8[%c0_31, %c0_32, %c128_33] : memref<2x16x384xf32, #tpu.memory_space<vmem>>, vector<2x16x128xf32>
    tpu.vector_store %arg8[%c0_31, %c0_32, %c128_33], %30 {strides = array<i32>} : memref<2x16x384xf32, #tpu.memory_space<vmem>>, vector<2x16x128xf32>,
    %cst_34 = arith.constant 0.000000e+00 : f32
    %32 = vector.broadcast %cst_34 : f32 to vector<2x1x128xf32>
    %c0_35 = arith.constant 0 : index
    %c15_36 = arith.constant 15 : index
    %c256 = arith.constant 256 : index
    %33 = vector.load %arg8[%c0_35, %c15_36, %c256] : memref<2x16x384xf32, #tpu.memory_space<vmem>>, vector<2x1x128xf32>
    tpu.vector_store %arg8[%c0_35, %c15_36, %c256], %32 {strides = array<i32>} : memref<2x16x384xf32, #tpu.memory_space<vmem>>, vector<2x1x128xf32>,
    %34 = vector.extract_strided_slice %25 {offsets = [0, 1, 0], sizes = [2, 15, 128], strides = [1, 1, 1]} : vector<2x16x128xf32> to vector<2x15x128xf32>
    %c0_37 = arith.constant 0 : index
    %c0_38 = arith.constant 0 : index
    %c256_39 = arith.constant 256 : index
    %35 = vector.load %arg8[%c0_37, %c0_38, %c256_39] : memref<2x16x384xf32, #tpu.memory_space<vmem>>, vector<2x15x128xf32>
    tpu.vector_store %arg8[%c0_37, %c0_38, %c256_39], %34 {strides = array<i32>} : memref<2x16x384xf32, #tpu.memory_space<vmem>>, vector<2x15x128xf32>,
    %c0_40 = arith.constant 0 : index
    %c0_41 = arith.constant 0 : index
    %c0_42 = arith.constant 0 : index
    %36 = vector.load %arg8[%c0_40, %c0_41, %c0_42] : memref<2x16x384xf32, #tpu.memory_space<vmem>>, vector<2x16x384xf32>
    %37 = vector.shape_cast %36 : vector<2x16x384xf32> to vector<32x384xf32>
    %38 = arith.truncf %37 : vector<32x384xf32> to vector<32x384xbf16>
    %c0_43 = arith.constant 0 : index
    %c0_44 = arith.constant 0 : index
    %39 = vector.load %arg4[%c0_43, %c0_44] : memref<384x128xbf16, #tpu.memory_space<vmem>>, vector<384x128xbf16>
    %cst_45 = arith.constant dense<0.000000e+00> : vector<32x128xf32>
    %40 = tpu.matmul %38, %39, %cst_45 {dimension_numbers = #tpu.dot_dimension_numbers<[1], [0], [0], [1], [0, 0, 1, 1], [], []>} : vector<32x384xbf16>, vector<384x128xbf16>, vector<32x128xf32> -> vector<32x128xf32>
    %c0_46 = arith.constant 0 : index
    %c0_47 = arith.constant 0 : index
    %41 = vector.load %arg5[%c0_46, %c0_47] : memref<1x128xf32, #tpu.memory_space<vmem>>, vector<1x128xf32>
    %42 = vector.broadcast %41 : vector<1x128xf32> to vector<32x128xf32>
    %43 = arith.addf %40, %42 : vector<32x128xf32>
    %44 = vector.shape_cast %43 : vector<32x128xf32> to vector<2x16x128xf32>
    %c0_48 = arith.constant 0 : index
    %c0_49 = arith.constant 0 : index
    %c0_50 = arith.constant 0 : index
    %45 = vector.load %arg6[%c0_48, %c0_49, %c0_50] : memref<2x16x128xf32, #tpu.memory_space<vmem>>, vector<2x16x128xf32>
    tpu.vector_store %arg6[%c0_48, %c0_49, %c0_50], %44 {strides = array<i32>} : memref<2x16x128xf32, #tpu.memory_space<vmem>>, vector<2x16x128xf32>,
    return
  }
  func.func @transform_0(%arg0: i32) -> (i32, i32, i32) {
    %c0_i32 = arith.constant 0 : i32
    %c0_i32_0 = arith.constant 0 : i32
    %c0_i32_1 = arith.constant 0 : i32
    return %arg0, %c0_i32, %c0_i32_0 : i32, i32, i32
  }
  func.func @transform_1(%arg0: i32) -> (i32, i32) {
    %c0_i32 = arith.constant 0 : i32
    %c0_i32_0 = arith.constant 0 : i32
    %c0_i32_1 = arith.constant 0 : i32
    return %c0_i32, %c0_i32_0 : i32, i32
  }
  func.func @transform_2(%arg0: i32) -> (i32, i32) {
    %c0_i32 = arith.constant 0 : i32
    %c0_i32_0 = arith.constant 0 : i32
    %c0_i32_1 = arith.constant 0 : i32
    return %c0_i32, %c0_i32_0 : i32, i32
  }
  func.func @transform_3(%arg0: i32) -> (i32, i32) {
    %c0_i32 = arith.constant 0 : i32
    %c0_i32_0 = arith.constant 0 : i32
    %c0_i32_1 = arith.constant 0 : i32
    return %c0_i32, %c0_i32_0 : i32, i32
  }
  func.func @transform_4(%arg0: i32) -> (i32, i32) {
    %c0_i32 = arith.constant 0 : i32
    %c0_i32_0 = arith.constant 0 : i32
    %c0_i32_1 = arith.constant 0 : i32
    return %c0_i32, %c0_i32_0 : i32, i32
  }
  func.func @transform_5(%arg0: i32) -> (i32, i32, i32) {
    %c0_i32 = arith.constant 0 : i32
    %c0_i32_0 = arith.constant 0 : i32
    %c0_i32_1 = arith.constant 0 : i32
    return %arg0, %c0_i32, %c0_i32_0 : i32, i32, i32
  }
}

</mosaic_0001>

<llo_original>
// kernel: tpu_custom_call.1
$region0: #{tpu_custom_call.1}
  #allocation0 [shape = 'u32[]', space=smem, size = 0x4, offset = 0x4, fixed_abs, tag = 'smem constant byte address 0x4 - core index']
  #allocation1 [shape = 'u32[144,128]{1,0:T(1,128)}', space=vmem, size = 0x12000, scoped, tag = 'internal scratch']
  #allocation2 [shape = 'f32[2,16,192]{2,1,0:T(8,128)}', space=vmem, size = 0x8000, scoped, tag = 'scratch operand']
  #allocation3 [shape = 'f32[2,16,384]{2,1,0:T(8,128)}', space=vmem, size = 0xc000, scoped, tag = 'scratch operand']
  %s0 = inlined_call_operand.hbm [shape: bf16[2,16,64], index: 0, kind: input, shape index: {}]
  %s1 = inlined_call_operand.hbm [shape: bf16[192,128], index: 1, kind: input, shape index: {}]
  %s2 = inlined_call_operand.vmem [shape: f32[1,128], index: 2, kind: input, shape index: {}]
  %s3 = inlined_call_operand.hbm [shape: bf16[384,128], index: 3, kind: input, shape index: {}]
  %s4 = inlined_call_operand.vmem [shape: f32[1,128], index: 4, kind: input, shape index: {}]
  %s5 = inlined_call_operand.hbm [shape: f32[2,16,128], index: 5, kind: output, shape index: {}]
  %s6 = sld [smem:[#allocation0]]
  $region42: #{tpu_custom_call.1} parent=0
    _
  %s8 = ssub.s32 1, %s6
  %s9 = scalar_select 0, %s8, %s6
  $region1: #{tpu_custom_call.1} parent=0
    #allocation4 [shape = 'u8[8192]{0}', space=vmem, size = 0x2000, scoped, tag = 'input window, operand 0, single buffered']
    #allocation5 [shape = 's32[1]{0}', space=sflag, size = 0x4, scoped, tag = 'scoped memory for tpu_custom_call.1']
    #allocation6 [shape = 's32[1]{0}', space=sflag, size = 0x4, scoped, tag = 'scoped memory for tpu_custom_call.1']
    #allocation7 [shape = 'u8[49152]{0}', space=vmem, size = 0xc000, scoped, tag = 'input window, operand 1, single buffered']
    #allocation8 [shape = 's32[1]{0}', space=sflag, size = 0x4, scoped, tag = 'scoped memory for tpu_custom_call.1']
    #allocation9 [shape = 'u8[98304]{0}', space=vmem, size = 0x18000, scoped, tag = 'input window, operand 3, single buffered']
    #allocation10 [shape = 'u8[16384]{0}', space=vmem, size = 0x4000, scoped, tag = 'output window, operand 0, single buffered']
    %10 = vsyncpa [#allocation5], 0
    %11 = vsyncpa [#allocation8], 0
    %12 = vsyncpa [#allocation6], 0
    // Predicated region
    $region2: #{tpu_custom_call.1} parent=1 // pred_check
      _
    $region3: #{tpu_custom_call.1} parent=1 // pred_check_branch
      %14 = sbr.rel (0) target = $region5
    $region4: #{tpu_custom_call.1} parent=1 // pred_region
      %s16 = ssub.s32 256, 256
      %17 = vsyncadd [#allocation5], %s16
      %s18 = sshll.u32 [#allocation4], 4
      %s19 = int_to_ptr.vmem [resolvable:$true] %s18
      %24 = dma.hbm_to_vmem [thread:$0]  %s0, 256, %s19, [#allocation5], 64, 64, 4
    $region5: #{tpu_custom_call.1} parent=1 // pred_fallthru
      _
    // Predicated region
    $region6: #{tpu_custom_call.1} parent=1 // pred_check
      _
    $region7: #{tpu_custom_call.1} parent=1 // pred_check_branch
      %26 = sbr.rel (0) target = $region9
    $region8: #{tpu_custom_call.1} parent=1 // pred_region
      %s28 = ssub.s32 1536, 1536
      %29 = vsyncadd [#allocation8], %s28
      %s30 = sshll.u32 [#allocation7], 4
      %s31 = int_to_ptr.vmem [resolvable:$true] %s30
      %36 = dma.hbm_to_vmem [thread:$0]  %s1, 1536, %s31, [#allocation8], 64, 64, 4
    $region9: #{tpu_custom_call.1} parent=1 // pred_fallthru
      _
    // Predicated region
    $region10: #{tpu_custom_call.1} parent=1 // pred_check
      _
    $region11: #{tpu_custom_call.1} parent=1 // pred_check_branch
      %38 = sbr.rel (0) target = $region13
    $region12: #{tpu_custom_call.1} parent=1 // pred_region
      _
    $region13: #{tpu_custom_call.1} parent=1 // pred_fallthru
      _
    // Predicated region
    $region14: #{tpu_custom_call.1} parent=1 // pred_check
      _
    $region15: #{tpu_custom_call.1} parent=1 // pred_check_branch
      %40 = sbr.rel (0) target = $region17
    $region16: #{tpu_custom_call.1} parent=1 // pred_region
      %s42 = ssub.s32 3072, 3072
      %43 = vsyncadd [#allocation8], %s42
      %s44 = sshll.u32 [#allocation9], 4
      %s45 = int_to_ptr.vmem [resolvable:$true] %s44
      %50 = dma.hbm_to_vmem [thread:$0]  %s3, 3072, %s45, [#allocation8], 64, 64, 4
    $region17: #{tpu_custom_call.1} parent=1 // pred_fallthru
      _
    // Predicated region
    $region18: #{tpu_custom_call.1} parent=1 // pred_check
      _
    $region19: #{tpu_custom_call.1} parent=1 // pred_check_branch
      %52 = sbr.rel (0) target = $region21
    $region20: #{tpu_custom_call.1} parent=1 // pred_region
      _
    $region21: #{tpu_custom_call.1} parent=1 // pred_fallthru
      _
    // Predicated region
    $region22: #{tpu_custom_call.1} parent=1 // pred_check
      _
    $region23: #{tpu_custom_call.1} parent=1 // pred_check_branch
      %54 = sbr.rel (0) target = $region25
    $region24: #{tpu_custom_call.1} parent=1 // pred_region
      %55 = dma.done [#allocation5], 256
    $region25: #{tpu_custom_call.1} parent=1 // pred_fallthru
      _
    // Predicated region
    $region26: #{tpu_custom_call.1} parent=1 // pred_check
      _
    $region27: #{tpu_custom_call.1} parent=1 // pred_check_branch
      %57 = sbr.rel (0) target = $region29
    $region28: #{tpu_custom_call.1} parent=1 // pred_region
      %58 = dma.done [#allocation8], 1536
    $region29: #{tpu_custom_call.1} parent=1 // pred_fallthru
      _
    // Predicated region
    $region30: #{tpu_custom_call.1} parent=1 // pred_check
      _
    $region31: #{tpu_custom_call.1} parent=1 // pred_check_branch
      %60 = sbr.rel (0) target = $region33
    $region32: #{tpu_custom_call.1} parent=1 // pred_region
      %61 = dma.done [#allocation8], 3072
    $region33: #{tpu_custom_call.1} parent=1 // pred_fallthru
      _
    %v63 = vld [vmem:[#allocation4] sm:$0xf]
    %v64 = vld [vmem:[#allocation4 + $0x4] sm:$0xf]
    %v65 = vld [vmem:[#allocation4 + $0x8] sm:$0xf]
    %v66 = vld [vmem:[#allocation4 + $0xc] sm:$0xf]
    %v67 = vunpack.c.l.bf16 %v63
    %v68 = vunpack.c.l.bf16 %v64
    %v69 = vunpack.c.l.bf16 %v65
    %v70 = vunpack.c.l.bf16 %v66
    %vm71 = vcmask 516096
    %72 = vst.msk [vmem:[#allocation2] sm:$0x1] %vm71, 0.0
    %73 = vst.msk [vmem:[#allocation2 + $0x20] sm:$0x1] %vm71, 0.0
    %vm78 = vcmask 1040384
    %v79 = vrot.slane %v67, 7
    %v80 = vrot.slane %v68, 7
    %v81 = vsel %vm78, %v79, %v80
    %v82 = vrot.slane %v69, 7
    %v83 = vrot.slane %v70, 7
    %v84 = vsel %vm78, %v82, %v83
    %vm89 = vcmask 523265
    %90 = vst.msk [vmem:[#allocation2] sm:$0xfe] %vm89, %v79
    %vm91 = vcmask 523264
    %92 = vst.msk [vmem:[#allocation2 + $0x10] sm:$0xff] %vm91, %v81
    %93 = vst.msk [vmem:[#allocation2 + $0x20] sm:$0xfe] %vm89, %v82
    %94 = vst.msk [vmem:[#allocation2 + $0x30] sm:$0xff] %vm91, %v84
    %95 = vrot.lane.b32.xlu0 %v67, 64
    %v96 = vpop.permute.xlu0 %95
    %97 = vrot.lane.b32.xlu0 %v68, 64
    %v98 = vpop.permute.xlu0 %97
    %99 = vrot.lane.b32.xlu0 %v69, 64
    %v100 = vpop.permute.xlu0 %99
    %101 = vrot.lane.b32.xlu0 %v70, 64
    %v102 = vpop.permute.xlu0 %101
    %vm107 = vcmask 1048064
    %108 = vst.msk [vmem:[#allocation2] sm:$0xff] %vm107, %v96
    %109 = vst.msk [vmem:[#allocation2 + $0x10] sm:$0xff] %vm107, %v98
    %110 = vst.msk [vmem:[#allocation2 + $0x20] sm:$0xff] %vm107, %v100
    %111 = vst.msk [vmem:[#allocation2 + $0x30] sm:$0xff] %vm107, %v102
    %112 = vst.msk [vmem:[#allocation2 + $0x1f] sm:$0x1] %vm71, 0.0
    %113 = vst.msk [vmem:[#allocation2 + $0x3f] sm:$0x1] %vm71, 0.0
    %vm114 = vcmask 1046528
    %v115 = vrot.slane %v67, 1
    %v116 = vrot.slane %v68, 1
    %v117 = vsel %vm114, %v115, %v116
    %v118 = vrot.slane %v69, 1
    %v119 = vrot.slane %v70, 1
    %v120 = vsel %vm114, %v118, %v119
    %125 = vst.msk [vmem:[#allocation2 + $0x8] sm:$0xff] %vm91, %v117
    %vm126 = vcmask 522240
    %127 = vst.msk [vmem:[#allocation2 + $0x18] sm:$0x7f] %vm126, %v116
    %128 = vst.msk [vmem:[#allocation2 + $0x28] sm:$0xff] %vm91, %v120
    %129 = vst.msk [vmem:[#allocation2 + $0x38] sm:$0x7f] %vm126, %v119
    %v130 = vld [vmem:[#allocation2] sm:$0xff]
    %v131 = vld [vmem:[#allocation2 + $0x8] sm:$0xff]
    %v132 = vld [vmem:[#allocation2 + $0x10] sm:$0xff]
    %v133 = vld [vmem:[#allocation2 + $0x18] sm:$0xff]
    %v134 = vld [vmem:[#allocation2 + $0x20] sm:$0xff]
    %v135 = vld [vmem:[#allocation2 + $0x28] sm:$0xff]
    %v136 = vld [vmem:[#allocation2 + $0x30] sm:$0xff]
    %v137 = vld [vmem:[#allocation2 + $0x38] sm:$0xff]
    %v138 = vpack.c.bf16 %v132, %v130
    %v139 = vpack.c.bf16 %v133, %v131
    %v140 = vpack.c.bf16 %v136, %v134
    %v141 = vpack.c.bf16 %v137, %v135
    %v142 = vld [vmem:[#allocation7] sm:$0xf]
    %v143 = vld [vmem:[#allocation7 + $0x4] sm:$0xf]
    %v144 = vld [vmem:[#allocation7 + $0x8] sm:$0xf]
    %v145 = vld [vmem:[#allocation7 + $0xc] sm:$0xf]
    %v146 = vld [vmem:[#allocation7 + $0x10] sm:$0xf]
    %v147 = vld [vmem:[#allocation7 + $0x14] sm:$0xf]
    %v148 = vld [vmem:[#allocation7 + $0x18] sm:$0xf]
    %v149 = vld [vmem:[#allocation7 + $0x1c] sm:$0xf]
    %v150 = vld [vmem:[#allocation7 + $0x20] sm:$0xf]
    %v151 = vld [vmem:[#allocation7 + $0x24] sm:$0xf]
    %v152 = vld [vmem:[#allocation7 + $0x28] sm:$0xf]
    %v153 = vld [vmem:[#allocation7 + $0x2c] sm:$0xf]
    %v154 = vld [vmem:[#allocation7 + $0x30] sm:$0xf]
    %v155 = vld [vmem:[#allocation7 + $0x34] sm:$0xf]
    %v156 = vld [vmem:[#allocation7 + $0x38] sm:$0xf]
    %v157 = vld [vmem:[#allocation7 + $0x3c] sm:$0xf]
    %v158 = vld [vmem:[#allocation7 + $0x40] sm:$0xf]
    %v159 = vld [vmem:[#allocation7 + $0x44] sm:$0xf]
    %v160 = vld [vmem:[#allocation7 + $0x48] sm:$0xf]
    %v161 = vld [vmem:[#allocation7 + $0x4c] sm:$0xf]
    %v162 = vld [vmem:[#allocation7 + $0x50] sm:$0xf]
    %v163 = vld [vmem:[#allocation7 + $0x54] sm:$0xf]
    %v164 = vld [vmem:[#allocation7 + $0x58] sm:$0xf]
    %v165 = vld [vmem:[#allocation7 + $0x5c] sm:$0xf]
    %v166 = vld [vmem:[%s2] sm:$0x1]
    %v168 = vlaneseq
    %v169 = vshrl.u32 %v168, 7
    %v170 = vsub.s32 0, %v169
    %v171 = vrot.slane %v166, %v170
    %v197 = vunpack.c.l.b16 %v142
    %v198 = vunpack.c.l.b16 %v143
    %v199 = vunpack.c.l.b16 %v144
    %v200 = vunpack.c.l.b16 %v145
    %v201 = vunpack.c.l.b16 %v146
    %v202 = vunpack.c.l.b16 %v147
    %v203 = vunpack.c.l.b16 %v148
    %v204 = vunpack.c.l.b16 %v149
    %v205 = vunpack.c.l.b16 %v150
    %v206 = vunpack.c.l.b16 %v151
    %v207 = vunpack.c.l.b16 %v152
    %v208 = vunpack.c.l.b16 %v153
    %v209 = vunpack.c.l.b16 %v154
    %v210 = vunpack.c.l.b16 %v155
    %v211 = vunpack.c.l.b16 %v156
    %v212 = vunpack.c.l.b16 %v157
    %v213 = vunpack.c.l.b16 %v158
    %v214 = vunpack.c.l.b16 %v159
    %v215 = vunpack.c.l.b16 %v160
    %v216 = vunpack.c.l.b16 %v161
    %v217 = vunpack.c.l.b16 %v162
    %v218 = vunpack.c.l.b16 %v163
    %v219 = vunpack.c.l.b16 %v164
    %v220 = vunpack.c.l.b16 %v165
    %v221 = vpack.c.b16 %v198, %v197
    %v222 = vpack.c.b16 %v200, %v199
    %v223 = vpack.c.b16 %v202, %v201
    %v224 = vpack.c.b16 %v204, %v203
    %v225 = vpack.c.b16 %v206, %v205
    %v226 = vpack.c.b16 %v208, %v207
    %v227 = vpack.c.b16 %v210, %v209
    %v228 = vpack.c.b16 %v212, %v211
    %v229 = vpack.c.b16 %v214, %v213
    %v230 = vpack.c.b16 %v216, %v215
    %v231 = vpack.c.b16 %v218, %v217
    %v232 = vpack.c.b16 %v220, %v219
    %v246 = vsel %vm91, %v139, 0
    %v249 = vsel %vm91, %v141, 0
    %251 = vmatprep.subr.bf16.mxu0 0
    %252 = vmatpush1.bf16.msra.mxu0 %v221
    %253 = vmatprep.subr.bf16.mxu0 0
    %254 = vmatpush1.bf16.msra.mxu0 %v222
    %255 = vmatprep.subr.bf16.mxu0 0
    %256 = vmatpush1.bf16.msra.mxu0 %v223
    %257 = vmatprep.subr.bf16.mxu0 0
    %258 = vmatpush1.bf16.msra.mxu0 %v224
    %259 = vmatprep.subr.bf16.mxu0 0
    %260 = vmatpush1.bf16.msra.mxu0 %v225
    %261 = vmatprep.subr.bf16.mxu0 0
    %262 = vmatpush1.bf16.msra.mxu0 %v226
    %263 = vmatprep.subr.bf16.mxu0 0
    %264 = vmatpush1.bf16.msra.mxu0 %v227
    %265 = vmatprep.subr.bf16.mxu0 0
    %266 = vmatpush1.bf16.msra.mxu0 %v228
    %267 = vmatprep.subr.bf16.mxu0 0
    %268 = vmatpush1.bf16.msra.mxu0 %v229
    %269 = vmatprep.subr.bf16.mxu0 0
    %270 = vmatpush1.bf16.msra.mxu0 %v230
    %271 = vmatprep.subr.bf16.mxu0 0
    %272 = vmatpush1.bf16.msra.mxu0 %v231
    %273 = vmatprep.subr.bf16.mxu0 0
    %274 = vmatpush1.bf16.msra.mxu0 %v232
    %275 = vmatprep.subr.bf16.mxu0 0
    %276 = vmatpush1.bf16.msra.mxu0 0
    %277 = vmatprep.subr.bf16.mxu0 0
    %278 = vmatpush1.bf16.msra.mxu0 0
    %279 = vmatprep.subr.bf16.mxu0 0
    %280 = vmatpush1.bf16.msra.mxu0 0
    %281 = vmatprep.subr.bf16.mxu0 0
    %282 = vmatpush1.bf16.msra.mxu0 0
    %283 = vmatprep.mubr.bf16.mxu0 %v246
    %284 = vmatmul.mubr.bf16.gmra.mrb[0].mxu0 %v138
    %v285 = vpop.f32.mrb[0].mxu0
    %v286 = vadd.f32 %v171, %v285
    %v287 = vpop.f32.mrb[0].mxu0
    %v288 = vpop.f32.mrb[0].mxu0
    %v289 = vadd.f32 %v171, %v288
    %v290 = vpop.f32.mrb[0].mxu0
    %291 = vmatprep.mubr.bf16.mxu0 %v249
    %292 = vmatmul.mubr.bf16.gmra.mrb[0].mxu0 %v140
    %v293 = vpop.f32.mrb[0].mxu0
    %v294 = vadd.f32 %v171, %v293
    %v295 = vpop.f32.mrb[0].mxu0
    %v296 = vpop.f32.mrb[0].mxu0
    %v297 = vadd.f32 %v171, %v296
    %v298 = vpop.f32.mrb[0].mxu0
    %299 = vdwg.mxu0
    %vm300 = vcmp.ge.f32.partialorder %v286, 0.0
    %vm301 = vcmp.ge.f32.partialorder %v289, 0.0
    %vm302 = vcmp.ge.f32.partialorder %v294, 0.0
    %vm303 = vcmp.ge.f32.partialorder %v297, 0.0
    %v304 = vmul.f32 %v286, 0.01
    %v305 = vmul.f32 %v289, 0.01
    %v306 = vmul.f32 %v294, 0.01
    %v307 = vmul.f32 %v297, 0.01
    %v308 = vsel %vm300, %v286, %v304
    %v309 = vsel %vm301, %v289, %v305
    %v310 = vsel %vm302, %v294, %v306
    %v311 = vsel %vm303, %v297, %v307
    %312 = vst [vmem:[#allocation3] sm:$0x1] 0.0
    %313 = vst [vmem:[#allocation3 + $0x30] sm:$0x1] 0.0
    %v318 = vrot.slane %v308, 7
    %v319 = vrot.slane %v309, 7
    %v320 = vsel %vm78, %v318, %v319
    %v321 = vrot.slane %v310, 7
    %v322 = vrot.slane %v311, 7
    %v323 = vsel %vm78, %v321, %v322
    %328 = vst [vmem:[#allocation3] sm:$0xfe] %v318
    %329 = vst [vmem:[#allocation3 + $0x18] sm:$0xff] %v320
    %330 = vst [vmem:[#allocation3 + $0x30] sm:$0xfe] %v321
    %331 = vst [vmem:[#allocation3 + $0x48] sm:$0xff] %v323
    %332 = vst [vmem:[#allocation3 + $0x8] sm:$0xff] %v308
    %333 = vst [vmem:[#allocation3 + $0x20] sm:$0xff] %v309
    %334 = vst [vmem:[#allocation3 + $0x38] sm:$0xff] %v310
    %335 = vst [vmem:[#allocation3 + $0x50] sm:$0xff] %v311
    %336 = vst [vmem:[#allocation3 + $0x2f] sm:$0x1] 0.0
    %337 = vst [vmem:[#allocation3 + $0x5f] sm:$0x1] 0.0
    %v338 = vrot.slane %v308, 1
    %v339 = vrot.slane %v309, 1
    %v340 = vsel %vm114, %v338, %v339
    %v341 = vrot.slane %v310, 1
    %v342 = vrot.slane %v311, 1
    %v343 = vsel %vm114, %v341, %v342
    %348 = vst [vmem:[#allocation3 + $0x10] sm:$0xff] %v340
    %349 = vst [vmem:[#allocation3 + $0x28] sm:$0x7f] %v339
    %350 = vst [vmem:[#allocation3 + $0x40] sm:$0xff] %v343
    %351 = vst [vmem:[#allocation3 + $0x58] sm:$0x7f] %v342
    %v352 = vld [vmem:[#allocation3] sm:$0xff]
    %v353 = vld [vmem:[#allocation3 + $0x8] sm:$0xff]
    %v354 = vld [vmem:[#allocation3 + $0x10] sm:$0xff]
    %v355 = vld [vmem:[#allocation3 + $0x18] sm:$0xff]
    %v356 = vld [vmem:[#allocation3 + $0x20] sm:$0xff]
    %v357 = vld [vmem:[#allocation3 + $0x28] sm:$0xff]
    %v358 = vld [vmem:[#allocation3 + $0x30] sm:$0xff]
    %v359 = vld [vmem:[#allocation3 + $0x38] sm:$0xff]
    %v360 = vld [vmem:[#allocation3 + $0x40] sm:$0xff]
    %v361 = vld [vmem:[#allocation3 + $0x48] sm:$0xff]
    %v362 = vld [vmem:[#allocation3 + $0x50] sm:$0xff]
    %v363 = vld [vmem:[#allocation3 + $0x58] sm:$0xff]
    %v364 = vpack.c.bf16 %v355, %v352
    %v365 = vpack.c.bf16 %v356, %v353
    %v366 = vpack.c.bf16 %v357, %v354
    %v367 = vpack.c.bf16 %v361, %v358
    %v368 = vpack.c.bf16 %v362, %v359
    %v369 = vpack.c.bf16 %v363, %v360
    %v370 = vld [vmem:[#allocation9] sm:$0xf]
    %v371 = vld [vmem:[#allocation9 + $0x4] sm:$0xf]
    %v372 = vld [vmem:[#allocation9 + $0x8] sm:$0xf]
    %v373 = vld [vmem:[#allocation9 + $0xc] sm:$0xf]
    %v374 = vld [vmem:[#allocation9 + $0x10] sm:$0xf]
    %v375 = vld [vmem:[#allocation9 + $0x14] sm:$0xf]
    %v376 = vld [vmem:[#allocation9 + $0x18] sm:$0xf]
    %v377 = vld [vmem:[#allocation9 + $0x1c] sm:$0xf]
    %v378 = vld [vmem:[#allocation9 + $0x20] sm:$0xf]
    %v379 = vld [vmem:[#allocation9 + $0x24] sm:$0xf]
    %v380 = vld [vmem:[#allocation9 + $0x28] sm:$0xf]
    %v381 = vld [vmem:[#allocation9 + $0x2c] sm:$0xf]
    %v382 = vld [vmem:[#allocation9 + $0x30] sm:$0xf]
    %v383 = vld [vmem:[#allocation9 + $0x34] sm:$0xf]
    %v384 = vld [vmem:[#allocation9 + $0x38] sm:$0xf]
    %v385 = vld [vmem:[#allocation9 + $0x3c] sm:$0xf]
    %v386 = vld [vmem:[#allocation9 + $0x40] sm:$0xf]
    %v387 = vld [vmem:[#allocation9 + $0x44] sm:$0xf]
    %v388 = vld [vmem:[#allocation9 + $0x48] sm:$0xf]
    %v389 = vld [vmem:[#allocation9 + $0x4c] sm:$0xf]
    %v390 = vld [vmem:[#allocation9 + $0x50] sm:$0xf]
    %v391 = vld [vmem:[#allocation9 + $0x54] sm:$0xf]
    %v392 = vld [vmem:[#allocation9 + $0x58] sm:$0xf]
    %v393 = vld [vmem:[#allocation9 + $0x5c] sm:$0xf]
    %v394 = vld [vmem:[#allocation9 + $0x60] sm:$0xf]
    %v395 = vld [vmem:[#allocation9 + $0x64] sm:$0xf]
    %v396 = vld [vmem:[#allocation9 + $0x68] sm:$0xf]
    %v397 = vld [vmem:[#allocation9 + $0x6c] sm:$0xf]
    %v398 = vld [vmem:[#allocation9 + $0x70] sm:$0xf]
    %v399 = vld [vmem:[#allocation9 + $0x74] sm:$0xf]
    %v400 = vld [vmem:[#allocation9 + $0x78] sm:$0xf]
    %v401 = vld [vmem:[#allocation9 + $0x7c] sm:$0xf]
    %v402 = vld [vmem:[#allocation9 + $0x80] sm:$0xf]
    %v403 = vld [vmem:[#allocation9 + $0x84] sm:$0xf]
    %v404 = vld [vmem:[#allocation9 + $0x88] sm:$0xf]
    %v405 = vld [vmem:[#allocation9 + $0x8c] sm:$0xf]
    %v406 = vld [vmem:[#allocation9 + $0x90] sm:$0xf]
    %v407 = vld [vmem:[#allocation9 + $0x94] sm:$0xf]
    %v408 = vld [vmem:[#allocation9 + $0x98] sm:$0xf]
    %v409 = vld [vmem:[#allocation9 + $0x9c] sm:$0xf]
    %v410 = vld [vmem:[#allocation9 + $0xa0] sm:$0xf]
    %v411 = vld [vmem:[#allocation9 + $0xa4] sm:$0xf]
    %v412 = vld [vmem:[#allocation9 + $0xa8] sm:$0xf]
    %v413 = vld [vmem:[#allocation9 + $0xac] sm:$0xf]
    %v414 = vld [vmem:[#allocation9 + $0xb0] sm:$0xf]
    %v415 = vld [vmem:[#allocation9 + $0xb4] sm:$0xf]
    %v416 = vld [vmem:[#allocation9 + $0xb8] sm:$0xf]
    %v417 = vld [vmem:[#allocation9 + $0xbc] sm:$0xf]
    %v418 = vld [vmem:[%s4] sm:$0x1]
    %v420 = vlaneseq
    %v421 = vshrl.u32 %v420, 7
    %v422 = vsub.s32 0, %v421
    %v423 = vrot.slane %v418, %v422
    %v473 = vunpack.c.l.b16 %v370
    %v474 = vunpack.c.l.b16 %v371
    %v475 = vunpack.c.l.b16 %v372
    %v476 = vunpack.c.l.b16 %v373
    %v477 = vunpack.c.l.b16 %v374
    %v478 = vunpack.c.l.b16 %v375
    %v479 = vunpack.c.l.b16 %v376
    %v480 = vunpack.c.l.b16 %v377
    %v481 = vunpack.c.l.b16 %v378
    %v482 = vunpack.c.l.b16 %v379
    %v483 = vunpack.c.l.b16 %v380
    %v484 = vunpack.c.l.b16 %v381
    %v485 = vunpack.c.l.b16 %v382
    %v486 = vunpack.c.l.b16 %v383
    %v487 = vunpack.c.l.b16 %v384
    %v488 = vunpack.c.l.b16 %v385
    %v489 = vunpack.c.l.b16 %v386
    %v490 = vunpack.c.l.b16 %v387
    %v491 = vunpack.c.l.b16 %v388
    %v492 = vunpack.c.l.b16 %v389
    %v493 = vunpack.c.l.b16 %v390
    %v494 = vunpack.c.l.b16 %v391
    %v495 = vunpack.c.l.b16 %v392
    %v496 = vunpack.c.l.b16 %v393
    %v497 = vunpack.c.l.b16 %v394
    %v498 = vunpack.c.l.b16 %v395
    %v499 = vunpack.c.l.b16 %v396
    %v500 = vunpack.c.l.b16 %v397
    %v501 = vunpack.c.l.b16 %v398
    %v502 = vunpack.c.l.b16 %v399
    %v503 = vunpack.c.l.b16 %v400
    %v504 = vunpack.c.l.b16 %v401
    %v505 = vunpack.c.l.b16 %v402
    %v506 = vunpack.c.l.b16 %v403
    %v507 = vunpack.c.l.b16 %v404
    %v508 = vunpack.c.l.b16 %v405
    %v509 = vunpack.c.l.b16 %v406
    %v510 = vunpack.c.l.b16 %v407
    %v511 = vunpack.c.l.b16 %v408
    %v512 = vunpack.c.l.b16 %v409
    %v513 = vunpack.c.l.b16 %v410
    %v514 = vunpack.c.l.b16 %v411
    %v515 = vunpack.c.l.b16 %v412
    %v516 = vunpack.c.l.b16 %v413
    %v517 = vunpack.c.l.b16 %v414
    %v518 = vunpack.c.l.b16 %v415
    %v519 = vunpack.c.l.b16 %v416
    %v520 = vunpack.c.l.b16 %v417
    %v521 = vpack.c.b16 %v474, %v473
    %v522 = vpack.c.b16 %v476, %v475
    %v523 = vpack.c.b16 %v478, %v477
    %v524 = vpack.c.b16 %v480, %v479
    %v525 = vpack.c.b16 %v482, %v481
    %v526 = vpack.c.b16 %v484, %v483
    %v527 = vpack.c.b16 %v486, %v485
    %v528 = vpack.c.b16 %v488, %v487
    %v529 = vpack.c.b16 %v490, %v489
    %v530 = vpack.c.b16 %v492, %v491
    %v531 = vpack.c.b16 %v494, %v493
    %v532 = vpack.c.b16 %v496, %v495
    %v533 = vpack.c.b16 %v498, %v497
    %v534 = vpack.c.b16 %v500, %v499
    %v535 = vpack.c.b16 %v502, %v501
    %v536 = vpack.c.b16 %v504, %v503
    %v537 = vpack.c.b16 %v506, %v505
    %v538 = vpack.c.b16 %v508, %v507
    %v539 = vpack.c.b16 %v510, %v509
    %v540 = vpack.c.b16 %v512, %v511
    %v541 = vpack.c.b16 %v514, %v513
    %v542 = vpack.c.b16 %v516, %v515
    %v543 = vpack.c.b16 %v518, %v517
    %v544 = vpack.c.b16 %v520, %v519
    %569 = vmatprep.subr.bf16.mxu0 0
    %570 = vmatpush1.bf16.msra.mxu0 %v521
    %571 = vmatprep.subr.bf16.mxu0 0
    %572 = vmatpush1.bf16.msra.mxu0 %v522
    %573 = vmatprep.subr.bf16.mxu0 0
    %574 = vmatpush1.bf16.msra.mxu0 %v523
    %575 = vmatprep.subr.bf16.mxu0 0
    %576 = vmatpush1.bf16.msra.mxu0 %v524
    %577 = vmatprep.subr.bf16.mxu0 0
    %578 = vmatpush1.bf16.msra.mxu0 %v525
    %579 = vmatprep.subr.bf16.mxu0 0
    %580 = vmatpush1.bf16.msra.mxu0 %v526
    %581 = vmatprep.subr.bf16.mxu0 0
    %582 = vmatpush1.bf16.msra.mxu0 %v527
    %583 = vmatprep.subr.bf16.mxu0 0
    %584 = vmatpush1.bf16.msra.mxu0 %v528
    %585 = vmatprep.subr.bf16.mxu0 0
    %586 = vmatpush1.bf16.msra.mxu0 %v529
    %587 = vmatprep.subr.bf16.mxu0 0
    %588 = vmatpush1.bf16.msra.mxu0 %v530
    %589 = vmatprep.subr.bf16.mxu0 0
    %590 = vmatpush1.bf16.msra.mxu0 %v531
    %591 = vmatprep.subr.bf16.mxu0 0
    %592 = vmatpush1.bf16.msra.mxu0 %v532
    %593 = vmatprep.subr.bf16.mxu0 0
    %594 = vmatpush1.bf16.msra.mxu0 %v533
    %595 = vmatprep.subr.bf16.mxu0 0
    %596 = vmatpush1.bf16.msra.mxu0 %v534
    %597 = vmatprep.subr.bf16.mxu0 0
    %598 = vmatpush1.bf16.msra.mxu0 %v535
    %599 = vmatprep.subr.bf16.mxu0 0
    %600 = vmatpush1.bf16.msra.mxu0 %v536
    %601 = vmatprep.mubr.bf16.mxu0 %v365
    %602 = vmatmul.mubr.bf16.gmra.mrb[0].mxu0 %v364
    %v603 = vpop.f32.mrb[0].mxu0
    %v604 = vadd.f32 %v423, %v603
    %v605 = vpop.f32.mrb[0].mxu0
    %v606 = vpop.f32.mrb[0].mxu0
    %v607 = vadd.f32 %v423, %v606
    %v608 = vpop.f32.mrb[0].mxu0
    %609 = vmatprep.mubr.bf16.mxu0 %v368
    %610 = vmatmul.mubr.bf16.gmra.mrb[0].mxu0 %v367
    %v611 = vpop.f32.mrb[0].mxu0
    %v612 = vadd.f32 %v423, %v611
    %v613 = vpop.f32.mrb[0].mxu0
    %v614 = vpop.f32.mrb[0].mxu0
    %v615 = vadd.f32 %v423, %v614
    %v616 = vpop.f32.mrb[0].mxu0
    %617 = vdwg.mxu0
    %618 = vmatprep.subr.bf16.mxu0 0
    %619 = vmatpush1.bf16.msra.mxu0 %v537
    %620 = vmatprep.subr.bf16.mxu0 0
    %621 = vmatpush1.bf16.msra.mxu0 %v538
    %622 = vmatprep.subr.bf16.mxu0 0
    %623 = vmatpush1.bf16.msra.mxu0 %v539
    %624 = vmatprep.subr.bf16.mxu0 0
    %625 = vmatpush1.bf16.msra.mxu0 %v540
    %626 = vmatprep.subr.bf16.mxu0 0
    %627 = vmatpush1.bf16.msra.mxu0 %v541
    %628 = vmatprep.subr.bf16.mxu0 0
    %629 = vmatpush1.bf16.msra.mxu0 %v542
    %630 = vmatprep.subr.bf16.mxu0 0
    %631 = vmatpush1.bf16.msra.mxu0 %v543
    %632 = vmatprep.subr.bf16.mxu0 0
    %633 = vmatpush1.bf16.msra.mxu0 %v544
    %634 = vmatprep.subr.bf16.mxu0 0
    %635 = vmatpush1.bf16.msra.mxu0 0
    %636 = vmatprep.subr.bf16.mxu0 0
    %637 = vmatpush1.bf16.msra.mxu0 0
    %638 = vmatprep.subr.bf16.mxu0 0
    %639 = vmatpush1.bf16.msra.mxu0 0
    %640 = vmatprep.subr.bf16.mxu0 0
    %641 = vmatpush1.bf16.msra.mxu0 0
    %642 = vmatprep.subr.bf16.mxu0 0
    %643 = vmatpush1.bf16.msra.mxu0 0
    %644 = vmatprep.subr.bf16.mxu0 0
    %645 = vmatpush1.bf16.msra.mxu0 0
    %646 = vmatprep.subr.bf16.mxu0 0
    %647 = vmatpush1.bf16.msra.mxu0 0
    %648 = vmatprep.subr.bf16.mxu0 0
    %649 = vmatpush1.bf16.msra.mxu0 0
    %650 = vmatprep.mubr.bf16.mxu0 0
    %651 = vmatmul.mubr.bf16.gmra.mrb[0].mxu0 %v366
    %v652 = vpop.f32.mrb[0].mxu0
    %v653 = vadd.f32 %v604, %v652
    %v654 = vpop.f32.mrb[0].mxu0
    %v655 = vpop.f32.mrb[0].mxu0
    %v656 = vadd.f32 %v607, %v655
    %v657 = vpop.f32.mrb[0].mxu0
    %658 = vmatprep.mubr.bf16.mxu0 0
    %659 = vmatmul.mubr.bf16.gmra.mrb[0].mxu0 %v369
    %v660 = vpop.f32.mrb[0].mxu0
    %v661 = vadd.f32 %v612, %v660
    %v662 = vpop.f32.mrb[0].mxu0
    %v663 = vpop.f32.mrb[0].mxu0
    %v664 = vadd.f32 %v615, %v663
    %v665 = vpop.f32.mrb[0].mxu0
    %666 = vdwg.mxu0
    %667 = vst [vmem:[#allocation10] sm:$0xff] %v653
    %668 = vst [vmem:[#allocation10 + $0x8] sm:$0xff] %v656
    %669 = vst [vmem:[#allocation10 + $0x10] sm:$0xff] %v661
    %670 = vst [vmem:[#allocation10 + $0x18] sm:$0xff] %v664
    // Predicated region
    $region34: #{tpu_custom_call.1} parent=1 // pred_check
      _
    $region35: #{tpu_custom_call.1} parent=1 // pred_check_branch
      %672 = sbr.rel (0) target = $region37
    $region36: #{tpu_custom_call.1} parent=1 // pred_region
      %s674 = ssub.s32 512, 512
      %675 = vsyncadd [#allocation6], %s674
      %s676 = sshll.u32 [#allocation10], 4
      %s677 = int_to_ptr.vmem [resolvable:$true] %s676
      %682 = dma.vmem_to_hbm [thread:$0]  %s677, 512, %s5, [#allocation6], 128, 128, 8
    $region37: #{tpu_custom_call.1} parent=1 // pred_fallthru
      _
    // Predicated region
    $region38: #{tpu_custom_call.1} parent=1 // pred_check
      _
    $region39: #{tpu_custom_call.1} parent=1 // pred_check_branch
      %684 = sbr.rel (0) target = $region41
    $region40: #{tpu_custom_call.1} parent=1 // pred_region
      %685 = dma.done [#allocation6], 512
    $region41: #{tpu_custom_call.1} parent=1 // pred_fallthru
      _
    %686 = vsyncpa [#allocation5], 1
    %687 = vsyncpa [#allocation8], 1
    %688 = vsyncpa [#allocation6], 1

</llo_original>
